<compile_context>
chip_gen: v5e
topology: v5e:2x2
jax: 0.10.0
libtpu: 0.0.40
codegen_flags: <defaults>
</compile_context>

<pallas_src>
import jax
import jax.numpy as jnp
from jax.experimental import pallas as pl
from jax.experimental.pallas import tpu as pltpu


def _pegcn_kernel(x_ref, adj_ref, w_ref, gamma_ref, beta_ref, o_ref):
    # grid = (B,) ; one batch per step, all K propagation depths fused in-body.
    #   x_ref:     [1, N, D_in]     (this batch)
    #   adj_ref:   [1, K*N, N]      (this batch, K stacked along rows — free reshape)
    #   w_ref:     [K, D_in, D_out] (resident)
    #   gamma_ref: [1, D_out]       (resident)
    #   beta_ref:  [1, D_out]       (resident)
    #   o_ref:     [1, N, D_out]
    K, _, D_out = w_ref.shape
    N = x_ref.shape[1]

    x = x_ref[0]        # [N, D_in]
    adj = adj_ref[0]    # [K*N, N]

    # Stage 1: single fused MXU matmul over all K adjacency matrices.
    #   [K*N, N] @ [N, D_in] -> [K*N, D_in], f32 accumulation on the MXU.
    y = jnp.dot(adj, x, preferred_element_type=jnp.float32)
    # Keep MXU inputs in the compute dtype (bf16 when requested), acc stays f32.
    y = y.astype(x.dtype)

    # Stage 2: per-depth projection, static-unrolled (K is tiny & static).
    # Row slices of y are at multiples of N (sublane-tile aligned) -> free vreg picks.
    acc = jnp.zeros((N, D_out), jnp.float32)
    for k in range(K):
        y_k = y[k * N:(k + 1) * N, :]                               # [N, D_in]
        acc = acc + jnp.dot(y_k, w_ref[k],
                            preferred_element_type=jnp.float32)     # [N, D_out]

    # ReLU (dropout p=0.0 is identity) + LayerNorm over D_out, all in f32.
    h = jnp.maximum(acc, 0.0)
    mean = jnp.mean(h, axis=-1, keepdims=True)
    var = jnp.mean((h - mean) ** 2, axis=-1, keepdims=True)
    normed = (h - mean) * jax.lax.rsqrt(var + 1e-5)
    out = normed * gamma_ref[...] + beta_ref[...]
    o_ref[0] = out.astype(o_ref.dtype)


def pegcn_layer_batch_major(x_bnd, adj_batch, weight, gamma, beta, *,
                            compute_dtype=None):
    """Batch-major entry point (no wrapper transposes).

    x_bnd:     [B, N, D_in]
    adj_batch: [B, K, N, N]
    weight:    [K, D_in, D_out]
    gamma/beta:[D_out]
    Returns    [B, N, D_out].
    compute_dtype: optional dtype (e.g. jnp.bfloat16) for MXU inputs; the
    accumulation, LayerNorm and output stay in the input's f32 precision.
    """
    B, N, D_in = x_bnd.shape
    Bk, K, Na, Nb = adj_batch.shape
    Kw, Dw, D_out = weight.shape
    assert Bk == B and Na == N and Nb == N and Kw == K and Dw == D_in

    out_dtype = x_bnd.dtype

    # Free, contiguous reshape: stack the K adjacency matrices along rows.
    adj_flat = adj_batch.reshape(B, K * N, N)

    if compute_dtype is not None:
        x_bnd = x_bnd.astype(compute_dtype)
        adj_flat = adj_flat.astype(compute_dtype)
        weight = weight.astype(compute_dtype)

    gamma2 = gamma.reshape(1, D_out).astype(jnp.float32)
    beta2 = beta.reshape(1, D_out).astype(jnp.float32)

    return pl.pallas_call(
        _pegcn_kernel,
        out_shape=jax.ShapeDtypeStruct((B, N, D_out), out_dtype),
        grid_spec=pltpu.PrefetchScalarGridSpec(
            num_scalar_prefetch=0,
            grid=(B,),
            in_specs=[
                pl.BlockSpec((1, N, D_in), lambda b: (b, 0, 0)),      # x[b]
                pl.BlockSpec((1, K * N, N), lambda b: (b, 0, 0)),     # adj[b] (K-stacked)
                pl.BlockSpec((K, D_in, D_out), lambda b: (0, 0, 0)),  # weight (resident)
                pl.BlockSpec((1, D_out), lambda b: (0, 0)),           # gamma (resident)
                pl.BlockSpec((1, D_out), lambda b: (0, 0)),           # beta  (resident)
            ],
            out_specs=pl.BlockSpec((1, N, D_out), lambda b: (b, 0, 0)),
        ),
        # Parallel batch axis: shards batches across v7x's 2 TensorCores;
        # harmless on v5e/v6e.  (For large N, also raise vmem_limit_bytes and
        # tile the adjacency rows.)
        compiler_params=pltpu.CompilerParams(
            dimension_semantics=("parallel",)),
    )(x_bnd, adj_flat, weight, gamma2, beta2)


def pegcn_layer(x_nbd, adj_batch, weight, gamma, beta, *, compute_dtype=None):
    """PyTorch-layout wrapper.

    x_nbd: [N, B, D_in], adj_batch: [B, K, N, N], weight: [K, D_in, D_out],
    gamma/beta: [D_out].  Returns [N, B, D_out] (matching PyTorch).
    """
    out_bnd = pegcn_layer_batch_major(
        jnp.transpose(x_nbd, (1, 0, 2)), adj_batch, weight, gamma, beta,
        compute_dtype=compute_dtype)
    return jnp.transpose(out_bnd, (1, 0, 2))


def _reference(x_nbd, adj_batch, weight, gamma, beta):
    # pure-JAX replica of the PyTorch forward for a correctness check
    x = jnp.transpose(x_nbd, (1, 0, 2))[:, None, :, :]                  # [B,1,N,Din]
    x = jnp.broadcast_to(x, (x.shape[0], weight.shape[0]) + x.shape[2:])
    x = jnp.matmul(x, weight[None])                                     # [B,K,N,Dout]
    x = jnp.matmul(adj_batch, x)                                        # [B,K,N,Dout]
    x = x.sum(axis=1)                                                   # [B,N,Dout]
    x = jnp.transpose(x, (1, 0, 2))                                     # [N,B,Dout]
    x = jnp.maximum(x, 0.0)
    mean = x.mean(axis=-1, keepdims=True)
    var = ((x - mean) ** 2).mean(axis=-1, keepdims=True)
    return (x - mean) * jax.lax.rsqrt(var + 1e-5) * gamma + beta


if __name__ == "__main__":
    # small shapes: N=16 nodes, B=2 batch, D_in=32, D_out=32, prop_depth=3
    N, B, D_in, D_out, K = 16, 2, 32, 32, 3
    key = jax.random.PRNGKey(0)
    k1, k2, k3 = jax.random.split(key, 3)

    x = jax.random.normal(k1, (N, B, D_in), dtype=jnp.float32)
    adj = jax.random.uniform(k2, (B, K, N, N), dtype=jnp.float32)
    # nn.init.uniform_ -> U[0,1); LayerNorm: gamma=1, beta=0 (PyTorch defaults)
    weight = jax.random.uniform(k3, (K, D_in, D_out), dtype=jnp.float32)
    gamma = jnp.ones((D_out,), dtype=jnp.float32)
    beta = jnp.zeros((D_out,), dtype=jnp.float32)

    ref = _reference(x, adj, weight, gamma, beta)

    # f32 MXU path: matches the PyTorch forward bit-for-bit up to matmul
    # reassociation ((adj@x)@W vs adj@(x@W)).
    out = pegcn_layer(x, adj, weight, gamma, beta)
    jax.block_until_ready(out)
    assert out.shape == (N, B, D_out)
    assert jnp.allclose(out, ref, atol=5e-4, rtol=5e-4)

    # bf16 MXU-input path (f32 accumulation + f32 LayerNorm): loose check.
    out_bf16 = pegcn_layer(x, adj, weight, gamma, beta,
                           compute_dtype=jnp.bfloat16)
    jax.block_until_ready(out_bf16)
    assert out_bf16.shape == (N, B, D_out)
    assert jnp.allclose(out_bf16, ref, atol=2e-1, rtol=1e-1)

    print("KERNEL_OK")
</pallas_src>

<mosaic_0001>
module attributes {stable_mosaic.version = 11 : i64} {
  func.func @_pegcn_kernel(%arg0: i32, %arg1: memref<1x16x32xf32, #tpu.memory_space<vmem>>, %arg2: memref<1x48x16xf32, #tpu.memory_space<vmem>>, %arg3: memref<3x32x32xf32, #tpu.memory_space<vmem>>, %arg4: memref<1x32xf32, #tpu.memory_space<vmem>>, %arg5: memref<1x32xf32, #tpu.memory_space<vmem>>, %arg6: memref<1x16x32xf32, #tpu.memory_space<vmem>>) attributes {dimension_semantics = [#tpu.dimension_semantics<parallel>], iteration_bounds = array<i64: 2>, scalar_prefetch = 0 : i64, scratch_operands = 0 : i64, tpu.core_type = #tpu.core_type<tc>, window_params = [{transform_indices = @transform_0, window_bounds = array<i64: 1, 16, 32>}, {transform_indices = @transform_1, window_bounds = array<i64: 1, 48, 16>}, {pipeline_mode = #tpu.pipeline_mode<synchronous>, transform_indices = @transform_2, window_bounds = array<i64: 3, 32, 32>}, {pipeline_mode = #tpu.pipeline_mode<synchronous>, transform_indices = @transform_3, window_bounds = array<i64: 1, 32>}, {pipeline_mode = #tpu.pipeline_mode<synchronous>, transform_indices = @transform_4, window_bounds = array<i64: 1, 32>}, {transform_indices = @transform_5, window_bounds = array<i64: 1, 16, 32>}]} {
    %c0 = arith.constant 0 : index
    %c0_0 = arith.constant 0 : index
    %c0_1 = arith.constant 0 : index
    %0 = vector.load %arg1[%c0, %c0_0, %c0_1] : memref<1x16x32xf32, #tpu.memory_space<vmem>>, vector<1x16x32xf32>
    %1 = vector.shape_cast %0 : vector<1x16x32xf32> to vector<16x32xf32>
    %c0_2 = arith.constant 0 : index
    %c0_3 = arith.constant 0 : index
    %c0_4 = arith.constant 0 : index
    %2 = vector.load %arg2[%c0_2, %c0_3, %c0_4] : memref<1x48x16xf32, #tpu.memory_space<vmem>>, vector<1x48x16xf32>
    %3 = vector.shape_cast %2 : vector<1x48x16xf32> to vector<48x16xf32>
    %cst = arith.constant dense<0.000000e+00> : vector<48x32xf32>
    %4 = tpu.matmul %3, %1, %cst {dimension_numbers = #tpu.dot_dimension_numbers<[1], [0], [0], [1], [0, 0, 1, 1], [], []>} : vector<48x16xf32>, vector<16x32xf32>, vector<48x32xf32> -> vector<48x32xf32>
    %cst_5 = arith.constant 0.000000e+00 : f32
    %5 = vector.broadcast %cst_5 : f32 to vector<16x32xf32>
    %6 = vector.extract_strided_slice %4 {offsets = [0, 0], sizes = [16, 32], strides = [1, 1]} : vector<48x32xf32> to vector<16x32xf32>
    %c0_6 = arith.constant 0 : index
    %c0_7 = arith.constant 0 : index
    %c0_8 = arith.constant 0 : index
    %7 = vector.load %arg3[%c0_6, %c0_7, %c0_8] : memref<3x32x32xf32, #tpu.memory_space<vmem>>, vector<1x32x32xf32>
    %8 = vector.shape_cast %7 : vector<1x32x32xf32> to vector<32x32xf32>
    %cst_9 = arith.constant dense<0.000000e+00> : vector<16x32xf32>
    %9 = tpu.matmul %6, %8, %cst_9 {dimension_numbers = #tpu.dot_dimension_numbers<[1], [0], [0], [1], [0, 0, 1, 1], [], []>} : vector<16x32xf32>, vector<32x32xf32>, vector<16x32xf32> -> vector<16x32xf32>
    %10 = arith.addf %5, %9 : vector<16x32xf32>
    %11 = vector.extract_strided_slice %4 {offsets = [16, 0], sizes = [16, 32], strides = [1, 1]} : vector<48x32xf32> to vector<16x32xf32>
    %c1 = arith.constant 1 : index
    %c0_10 = arith.constant 0 : index
    %c0_11 = arith.constant 0 : index
    %12 = vector.load %arg3[%c1, %c0_10, %c0_11] : memref<3x32x32xf32, #tpu.memory_space<vmem>>, vector<1x32x32xf32>
    %13 = vector.shape_cast %12 : vector<1x32x32xf32> to vector<32x32xf32>
    %cst_12 = arith.constant dense<0.000000e+00> : vector<16x32xf32>
    %14 = tpu.matmul %11, %13, %cst_12 {dimension_numbers = #tpu.dot_dimension_numbers<[1], [0], [0], [1], [0, 0, 1, 1], [], []>} : vector<16x32xf32>, vector<32x32xf32>, vector<16x32xf32> -> vector<16x32xf32>
    %15 = arith.addf %10, %14 : vector<16x32xf32>
    %16 = vector.extract_strided_slice %4 {offsets = [32, 0], sizes = [16, 32], strides = [1, 1]} : vector<48x32xf32> to vector<16x32xf32>
    %c2 = arith.constant 2 : index
    %c0_13 = arith.constant 0 : index
    %c0_14 = arith.constant 0 : index
    %17 = vector.load %arg3[%c2, %c0_13, %c0_14] : memref<3x32x32xf32, #tpu.memory_space<vmem>>, vector<1x32x32xf32>
    %18 = vector.shape_cast %17 : vector<1x32x32xf32> to vector<32x32xf32>
    %cst_15 = arith.constant dense<0.000000e+00> : vector<16x32xf32>
    %19 = tpu.matmul %16, %18, %cst_15 {dimension_numbers = #tpu.dot_dimension_numbers<[1], [0], [0], [1], [0, 0, 1, 1], [], []>} : vector<16x32xf32>, vector<32x32xf32>, vector<16x32xf32> -> vector<16x32xf32>
    %20 = arith.addf %15, %19 : vector<16x32xf32>
    %cst_16 = arith.constant 0.000000e+00 : f32
    %21 = vector.broadcast %cst_16 : f32 to vector<16x32xf32>
    %22 = arith.maximumf %20, %21 : vector<16x32xf32>
    %cst_17 = arith.constant dense<0.000000e+00> : vector<16xf32>
    %23 = vector.multi_reduction <add>, %22, %cst_17 [1] : vector<16x32xf32> to vector<16xf32>
    %24 = vector.shape_cast %23 : vector<16xf32> to vector<16x1xf32>
    %cst_18 = arith.constant 3.200000e+01 : f32
    %25 = vector.broadcast %cst_18 : f32 to vector<16x1xf32>
    %26 = arith.divf %24, %25 : vector<16x1xf32>
    %27 = vector.broadcast %26 : vector<16x1xf32> to vector<16x32xf32>
    %28 = arith.subf %22, %27 : vector<16x32xf32>
    %29 = arith.mulf %28, %28 : vector<16x32xf32>
    %cst_19 = arith.constant dense<0.000000e+00> : vector<16xf32>
    %30 = vector.multi_reduction <add>, %29, %cst_19 [1] : vector<16x32xf32> to vector<16xf32>
    %31 = vector.shape_cast %30 : vector<16xf32> to vector<16x1xf32>
    %cst_20 = arith.constant 3.200000e+01 : f32
    %32 = vector.broadcast %cst_20 : f32 to vector<16x1xf32>
    %33 = arith.divf %31, %32 : vector<16x1xf32>
    %34 = vector.broadcast %26 : vector<16x1xf32> to vector<16x32xf32>
    %35 = arith.subf %22, %34 : vector<16x32xf32>
    %cst_21 = arith.constant 9.99999974E-6 : f32
    %36 = vector.broadcast %cst_21 : f32 to vector<16x1xf32>
    %37 = arith.addf %33, %36 : vector<16x1xf32>
    %38 = math.rsqrt %37 : vector<16x1xf32>
    %39 = vector.broadcast %38 : vector<16x1xf32> to vector<16x32xf32>
    %40 = arith.mulf %35, %39 : vector<16x32xf32>
    %c0_22 = arith.constant 0 : index
    %c0_23 = arith.constant 0 : index
    %41 = vector.load %arg4[%c0_22, %c0_23] : memref<1x32xf32, #tpu.memory_space<vmem>>, vector<1x32xf32>
    %42 = vector.broadcast %41 : vector<1x32xf32> to vector<16x32xf32>
    %43 = arith.mulf %40, %42 : vector<16x32xf32>
    %c0_24 = arith.constant 0 : index
    %c0_25 = arith.constant 0 : index
    %44 = vector.load %arg5[%c0_24, %c0_25] : memref<1x32xf32, #tpu.memory_space<vmem>>, vector<1x32xf32>
    %45 = vector.broadcast %44 : vector<1x32xf32> to vector<16x32xf32>
    %46 = arith.addf %43, %45 : vector<16x32xf32>
    %c0_26 = arith.constant 0 : index
    %c0_27 = arith.constant 0 : index
    %c0_28 = arith.constant 0 : index
    %47 = vector.load %arg6[%c0_26, %c0_27, %c0_28] : memref<1x16x32xf32, #tpu.memory_space<vmem>>, vector<1x16x32xf32>
    %48 = vector.shape_cast %47 : vector<1x16x32xf32> to vector<16x32xf32>
    %49 = vector.shape_cast %46 : vector<16x32xf32> to vector<1x16x32xf32>
    tpu.vector_store %arg6[%c0_26, %c0_27, %c0_28], %49 {strides = array<i32>} : memref<1x16x32xf32, #tpu.memory_space<vmem>>, vector<1x16x32xf32>,
    return
  }
  func.func @transform_0(%arg0: i32) -> (i32, i32, i32) {
    %c0_i32 = arith.constant 0 : i32
    %c0_i32_0 = arith.constant 0 : i32
    %c0_i32_1 = arith.constant 0 : i32
    return %arg0, %c0_i32, %c0_i32_0 : i32, i32, i32
  }
  func.func @transform_1(%arg0: i32) -> (i32, i32, i32) {
    %c0_i32 = arith.constant 0 : i32
    %c0_i32_0 = arith.constant 0 : i32
    %c0_i32_1 = arith.constant 0 : i32
    return %arg0, %c0_i32, %c0_i32_0 : i32, i32, i32
  }
  func.func @transform_2(%arg0: i32) -> (i32, i32, i32) {
    %c0_i32 = arith.constant 0 : i32
    %c0_i32_0 = arith.constant 0 : i32
    %c0_i32_1 = arith.constant 0 : i32
    %c0_i32_2 = arith.constant 0 : i32
    return %c0_i32, %c0_i32_0, %c0_i32_1 : i32, i32, i32
  }
  func.func @transform_3(%arg0: i32) -> (i32, i32) {
    %c0_i32 = arith.constant 0 : i32
    %c0_i32_0 = arith.constant 0 : i32
    %c0_i32_1 = arith.constant 0 : i32
    return %c0_i32, %c0_i32_0 : i32, i32
  }
  func.func @transform_4(%arg0: i32) -> (i32, i32) {
    %c0_i32 = arith.constant 0 : i32
    %c0_i32_0 = arith.constant 0 : i32
    %c0_i32_1 = arith.constant 0 : i32
    return %c0_i32, %c0_i32_0 : i32, i32
  }
  func.func @transform_5(%arg0: i32) -> (i32, i32, i32) {
    %c0_i32 = arith.constant 0 : i32
    %c0_i32_0 = arith.constant 0 : i32
    %c0_i32_1 = arith.constant 0 : i32
    return %arg0, %c0_i32, %c0_i32_0 : i32, i32, i32
  }
}

</mosaic_0001>

<llo_original>
// kernel: tpu_custom_call.1
$region0: #{tpu_custom_call.1}
  #allocation0 [shape = 'u32[]', space=smem, size = 0x4, offset = 0x4, fixed_abs, tag = 'smem constant byte address 0x4 - core index']
  #allocation1 [shape = 'u32[72,128]{1,0:T(1,128)}', space=vmem, size = 0x9000, scoped, tag = 'internal scratch']
  %s0 = inlined_call_operand.vmem [shape: f32[2,16,32], index: 0, kind: input, shape index: {}]
  %s1 = inlined_call_operand.vmem [shape: f32[2,48,16], index: 1, kind: input, shape index: {}]
  %s2 = inlined_call_operand.vmem [shape: f32[3,32,32], index: 2, kind: input, shape index: {}]
  %s3 = inlined_call_operand.vmem [shape: f32[1,32], index: 3, kind: input, shape index: {}]
  %s4 = inlined_call_operand.vmem [shape: f32[1,32], index: 4, kind: input, shape index: {}]
  %s5 = inlined_call_operand.hbm [shape: f32[2,16,32], index: 5, kind: output, shape index: {}]
  %s6 = sld [smem:[#allocation0]]
  $region53: #{tpu_custom_call.1} parent=0
    _
  %s8 = ssub.s32 1, %s6
  %s9 = scalar_select 0, %s8, %s6
  $region1: #{tpu_custom_call.1} parent=0
    #allocation2 [shape = 'u8[16384]{0}', space=vmem, size = 0x4000, scoped, tag = 'output window, operand 0']
    #allocation3 [shape = 's32[2]{0}', space=sflag, size = 0x8, scoped, tag = 'scoped memory for tpu_custom_call.1']
    %10 = vsyncpa [#allocation3], 0
    %s11 = scalar_lea.sflag [#allocation3], 1
    %12 = vsyncpa %s11, 0
    loop: start=0, step=1, limit=4
    $region2: #{tpu_custom_call.1} parent=1 // loop_pre_header
      _
    $region3: #{tpu_custom_call.1} parent=1 // loop_header
      %s14 = sphi 0, %s18
      %p15 = scmp.ge.s32.totalorder %s14, 4
      %s24 = sphi 0, %s26
      %s27 = sphi 0, %s24
      %s28 = sphi 0, %s27
      %s44 = sphi 0, %s28
      %s50 = sphi 0, %s52
      %s53 = sphi 0, %s50
      %s54 = sphi 0, %s53
      %s70 = sphi 0, %s54
      %s74 = sphi 0, %s74
      %s76 = sphi 0, %s74
      %s77 = sphi 0, %s76
      %s91 = sphi 0, %s77
      %s95 = sphi 0, %s95
      %s97 = sphi 0, %s95
      %s98 = sphi 0, %s97
      %s112 = sphi 0, %s98
      %s116 = sphi 0, %s116
      %s118 = sphi 0, %s116
      %s119 = sphi 0, %s118
      %s133 = sphi 0, %s119
      %s139 = sphi 0, %s141
      %s142 = sphi 0, %s139
      %s143 = sphi 0, %s142
      %s159 = sphi 0, %s143
    $region4: #{tpu_custom_call.1} parent=1 // loop_header_branch
      %17 = sbr.rel (%p15) target = $region8
    $region5: #{tpu_custom_call.1} parent=1 // loop_body
      %s19 = ssub.s32 %s14, 1
      %s20 = ssub.s32 %s14, 2
      %s21 = sadd.s32 %s14, 1
      %s22 = ssub.s32 %s14, %s21
      %p23 = scmp.eq.s32.totalorder %s22, 0
      %s25 = sadd.s32 %s24, 1
      %s26 = scalar_select %p23, %s24, %s25
      %p29 = pneg %p23
      %p30 = scmp.eq.s32.totalorder %s14, 1
      %p31 = por %p29, %p30
      %p32 = scmp.ne.s32.totalorder %s24, %s27
      %p33 = scmp.eq.s32.totalorder %s14, 0
      %p34 = por %p32, %p33
      %p35 = scmp.ne.s32.totalorder %s24, %s27
      %p36 = scmp.eq.s32.totalorder %s19, 1
      %p37 = por %p35, %p36
      %p38 = scmp.ne.s32.totalorder %s27, %s28
      %p39 = scmp.eq.s32.totalorder %s19, 0
      %p40 = por %p38, %p39
      %p41 = scmp.ne.s32.totalorder %s27, %s28
      %p42 = scmp.eq.s32.totalorder %s20, 1
      %p43 = por %p41, %p42
      %p45 = scmp.ne.s32.totalorder %s28, %s44
      %p46 = scmp.eq.s32.totalorder %s20, 0
      %p47 = por %p45, %p46
      %s48 = ssub.s32 %s14, %s21
      %p49 = scmp.eq.s32.totalorder %s48, 0
      %s51 = sadd.s32 %s50, 1
      %s52 = scalar_select %p49, %s50, %s51
      %p55 = pneg %p49
      %p56 = scmp.eq.s32.totalorder %s14, 1
      %p57 = por %p55, %p56
      %p58 = scmp.ne.s32.totalorder %s50, %s53
      %p59 = scmp.eq.s32.totalorder %s14, 0
      %p60 = por %p58, %p59
      %p61 = scmp.ne.s32.totalorder %s50, %s53
      %p62 = scmp.eq.s32.totalorder %s19, 1
      %p63 = por %p61, %p62
      %p64 = scmp.ne.s32.totalorder %s53, %s54
      %p65 = scmp.eq.s32.totalorder %s19, 0
      %p66 = por %p64, %p65
      %p67 = scmp.ne.s32.totalorder %s53, %s54
      %p68 = scmp.eq.s32.totalorder %s20, 1
      %p69 = por %p67, %p68
      %p71 = scmp.ne.s32.totalorder %s54, %s70
      %p72 = scmp.eq.s32.totalorder %s20, 0
      %p73 = por %p71, %p72
      %s75 = sadd.s32 %s74, 1
      %p78 = scmp.eq.s32.totalorder %s14, 1
      %p79 = scmp.ne.s32.totalorder %s74, %s76
      %p80 = scmp.eq.s32.totalorder %s14, 0
      %p81 = por %p79, %p80
      %p82 = scmp.ne.s32.totalorder %s74, %s76
      %p83 = scmp.eq.s32.totalorder %s19, 1
      %p84 = por %p82, %p83
      %p85 = scmp.ne.s32.totalorder %s76, %s77
      %p86 = scmp.eq.s32.totalorder %s19, 0
      %p87 = por %p85, %p86
      %p88 = scmp.ne.s32.totalorder %s76, %s77
      %p89 = scmp.eq.s32.totalorder %s20, 1
      %p90 = por %p88, %p89
      %p92 = scmp.ne.s32.totalorder %s77, %s91
      %p93 = scmp.eq.s32.totalorder %s20, 0
      %p94 = por %p92, %p93
      %s96 = sadd.s32 %s95, 1
      %p99 = scmp.eq.s32.totalorder %s14, 1
      %p100 = scmp.ne.s32.totalorder %s95, %s97
      %p101 = scmp.eq.s32.totalorder %s14, 0
      %p102 = por %p100, %p101
      %p103 = scmp.ne.s32.totalorder %s95, %s97
      %p104 = scmp.eq.s32.totalorder %s19, 1
      %p105 = por %p103, %p104
      %p106 = scmp.ne.s32.totalorder %s97, %s98
      %p107 = scmp.eq.s32.totalorder %s19, 0
      %p108 = por %p106, %p107
      %p109 = scmp.ne.s32.totalorder %s97, %s98
      %p110 = scmp.eq.s32.totalorder %s20, 1
      %p111 = por %p109, %p110
      %p113 = scmp.ne.s32.totalorder %s98, %s112
      %p114 = scmp.eq.s32.totalorder %s20, 0
      %p115 = por %p113, %p114
      %s117 = sadd.s32 %s116, 1
      %p120 = scmp.eq.s32.totalorder %s14, 1
      %p121 = scmp.ne.s32.totalorder %s116, %s118
      %p122 = scmp.eq.s32.totalorder %s14, 0
      %p123 = por %p121, %p122
      %p124 = scmp.ne.s32.totalorder %s116, %s118
      %p125 = scmp.eq.s32.totalorder %s19, 1
      %p126 = por %p124, %p125
      %p127 = scmp.ne.s32.totalorder %s118, %s119
      %p128 = scmp.eq.s32.totalorder %s19, 0
      %p129 = por %p127, %p128
      %p130 = scmp.ne.s32.totalorder %s118, %s119
      %p131 = scmp.eq.s32.totalorder %s20, 1
      %p132 = por %p130, %p131
      %p134 = scmp.ne.s32.totalorder %s119, %s133
      %p135 = scmp.eq.s32.totalorder %s20, 0
      %p136 = por %p134, %p135
      %s137 = ssub.s32 %s14, %s21
      %p138 = scmp.eq.s32.totalorder %s137, 0
      %s140 = sadd.s32 %s139, 1
      %s141 = scalar_select %p138, %s139, %s140
      %p144 = pneg %p138
      %p145 = scmp.eq.s32.totalorder %s14, 1
      %p146 = por %p144, %p145
      %p147 = scmp.ne.s32.totalorder %s139, %s142
      %p148 = scmp.eq.s32.totalorder %s14, 0
      %p149 = por %p147, %p148
      %p150 = scmp.ne.s32.totalorder %s139, %s142
      %p151 = scmp.eq.s32.totalorder %s19, 1
      %p152 = por %p150, %p151
      %p153 = scmp.ne.s32.totalorder %s142, %s143
      %p154 = scmp.eq.s32.totalorder %s19, 0
      %p155 = por %p153, %p154
      %p156 = scmp.ne.s32.totalorder %s142, %s143
      %p157 = scmp.eq.s32.totalorder %s20, 1
      %p158 = por %p156, %p157
      %p160 = scmp.ne.s32.totalorder %s143, %s159
      %p161 = scmp.eq.s32.totalorder %s20, 0
      %p162 = por %p160, %p161
      %p163 = scmp.le.s32.totalorder 1, %s14
      %p164 = scmp.lt.s32.totalorder %s14, 3
      %p165 = pnand %p163, %p164
      %p166 = pneg %p165
      // Predicated region
      $region9: #{tpu_custom_call.1} parent=5 // pred_check
        _
      $region10: #{tpu_custom_call.1} parent=5 // pred_check_branch
        %168 = sbr.rel (%p165) target = $region12
      $region11: #{tpu_custom_call.1} parent=5 // pred_region
        %s169 = ssub.s32 %s14, 1
        // Predicated region
        $region13: #{tpu_custom_call.1} parent=11 // pred_check
          %p170 = pneg %p87
        $region14: #{tpu_custom_call.1} parent=11 // pred_check_branch
          %172 = sbr.rel (%p170) target = $region16
        $region15: #{tpu_custom_call.1} parent=11 // pred_region
          _
        $region16: #{tpu_custom_call.1} parent=11 // pred_fallthru
          _
        // Predicated region
        $region17: #{tpu_custom_call.1} parent=11 // pred_check
          %p173 = pneg %p108
        $region18: #{tpu_custom_call.1} parent=11 // pred_check_branch
          %175 = sbr.rel (%p173) target = $region20
        $region19: #{tpu_custom_call.1} parent=11 // pred_region
          _
        $region20: #{tpu_custom_call.1} parent=11 // pred_fallthru
          _
        // Predicated region
        $region21: #{tpu_custom_call.1} parent=11 // pred_check
          %p176 = pneg %p129
        $region22: #{tpu_custom_call.1} parent=11 // pred_check_branch
          %178 = sbr.rel (%p176) target = $region24
        $region23: #{tpu_custom_call.1} parent=11 // pred_region
          _
        $region24: #{tpu_custom_call.1} parent=11 // pred_fallthru
          _
      $region12: #{tpu_custom_call.1} parent=5 // pred_fallthru
        _
      %p179 = scmp.lt.s32.totalorder %s14, 2
      // Predicated region
      $region25: #{tpu_custom_call.1} parent=5 // pred_check
        %p180 = pneg %p179
      $region26: #{tpu_custom_call.1} parent=5 // pred_check_branch
        %182 = sbr.rel (%p180) target = $region28
      $region27: #{tpu_custom_call.1} parent=5 // pred_region
        // Predicated region
        $region29: #{tpu_custom_call.1} parent=27 // pred_check
          %p183 = pneg %p34
        $region30: #{tpu_custom_call.1} parent=27 // pred_check_branch
          %185 = sbr.rel (%p183) target = $region32
        $region31: #{tpu_custom_call.1} parent=27 // pred_region
          %p186 = scmp.lt.s32.totalorder %s14, 1
          %s187 = scalar_select %p186, %s14, 1
          %s188 = smul.addr %s187, 2
          %s189 = smul.addr %s188, 8
          %s190 = scalar_lea.vmem %s0, %s189
        $region32: #{tpu_custom_call.1} parent=27 // pred_fallthru
          _
        // Predicated region
        $region33: #{tpu_custom_call.1} parent=27 // pred_check
          %p191 = pneg %p60
        $region34: #{tpu_custom_call.1} parent=27 // pred_check_branch
          %193 = sbr.rel (%p191) target = $region36
        $region35: #{tpu_custom_call.1} parent=27 // pred_region
          %p194 = scmp.lt.s32.totalorder %s14, 1
          %s195 = scalar_select %p194, %s14, 1
          %s196 = smul.addr %s195, 6
          %s197 = smul.addr %s196, 8
          %s198 = scalar_lea.vmem %s1, %s197
        $region36: #{tpu_custom_call.1} parent=27 // pred_fallthru
          _
      $region28: #{tpu_custom_call.1} parent=5 // pred_fallthru
        _
      %p199 = scmp.le.s32.totalorder 1, %s14
      %p200 = scmp.lt.s32.totalorder %s14, 3
      %p201 = pnand %p199, %p200
      %p202 = pneg %p201
      // Predicated region
      $region37: #{tpu_custom_call.1} parent=5 // pred_check
        _
      $region38: #{tpu_custom_call.1} parent=5 // pred_check_branch
        %204 = sbr.rel (%p201) target = $region40
      $region39: #{tpu_custom_call.1} parent=5 // pred_region
        %s205 = ssub.s32 %s14, 1
        %p206 = scmp.lt.s32.totalorder %s19, 1
        %s207 = scalar_select %p206, %s19, 1
        %s208 = smul.addr %s207, 2
        %s209 = smul.addr %s208, 8
        %s210 = scalar_lea.vmem %s0, %s209
        %p211 = pneg %p40
        %p212 = pneg %p37
        %p213 = scmp.lt.s32.totalorder %s19, 1
        %s214 = scalar_select %p213, %s19, 1
        %s215 = smul.addr %s214, 6
        %s216 = smul.addr %s215, 8
        %s217 = scalar_lea.vmem %s1, %s216
        %p218 = pneg %p66
        %p219 = pneg %p63
        %p220 = pneg %p87
        %p221 = pneg %p84
        %p222 = pneg %p108
        %p223 = pneg %p105
        %p224 = pneg %p129
        %p225 = pneg %p126
        %p226 = pneg %p155
        %p227 = pneg %p152
        %s228 = sand.u32 %s142, 1
        %s229 = scalar_lea.sflag [#allocation3], %s228
        %s230 = sand.u32 %s142, 1
        %s231 = smul.addr %s230, 16
        %s232 = scalar_lea.vmem [#allocation2], %s231
        %p233 = scmp.lt.s32.totalorder %s19, 1
        %s234 = scalar_select %p233, %s19, 1
        %s235 = smul.addr %s234, 2
        %s236 = smul.addr %s235, 8
        %s237 = scalar_lea.vmem %s0, %s236
        %p238 = scmp.lt.s32.totalorder %s19, 1
        %s239 = scalar_select %p238, %s19, 1
        %s240 = smul.addr %s239, 6
        %s241 = smul.addr %s240, 8
        %s242 = scalar_lea.vmem %s1, %s241
        %v243 = vld [vmem:[%s237] sm:$0xff]
        %v244 = vld [vmem:[%s237 + $0x8] sm:$0xff]
        %v245 = vld [vmem:[%s242] sm:$0xff]
        %v246 = vld [vmem:[%s242 + $0x8] sm:$0xff]
        %v247 = vld [vmem:[%s242 + $0x10] sm:$0xff]
        %v248 = vld [vmem:[%s242 + $0x18] sm:$0xff]
        %v249 = vld [vmem:[%s242 + $0x20] sm:$0xff]
        %v250 = vld [vmem:[%s242 + $0x28] sm:$0xff]
        %vm251 = vcmask 130048
        %v253 = vsel %vm251, %v245, 0
        %v256 = vsel %vm251, %v246, 0
        %v259 = vsel %vm251, %v247, 0
        %v262 = vsel %vm251, %v248, 0
        %v265 = vsel %vm251, %v249, 0
        %v268 = vsel %vm251, %v250, 0
        %270 = vmatpush.msra.mxu0 0.0
        %271 = vmatpush.msra.mxu0 0.0
        %272 = vmatpush.msra.mxu0 0.0
        %273 = vmatpush.msra.mxu0 0.0
        %274 = vmatpush.msra.mxu0 0.0
        %275 = vmatpush.msra.mxu0 0.0
        %276 = vmatpush.msra.mxu0 0.0
        %277 = vmatpush.msra.mxu0 0.0
        %278 = vmatpush.msra.mxu0 0.0
        %279 = vmatpush.msra.mxu0 0.0
        %280 = vmatpush.msra.mxu0 0.0
        %281 = vmatpush.msra.mxu0 0.0
        %282 = vmatpush.msra.mxu0 0.0
        %283 = vmatpush.msra.mxu0 0.0
        %284 = vmatpush.msra.mxu0 %v244
        %285 = vmatpush.msra.mxu0 %v243
        %286 = vmatmul.f32.gmra.mxu0 %v253
        %v287 = vpop.f32.mrf.mxu0
        %v288 = vadd.f32 0.0, %v287
        %289 = vmatmul.f32.gmra.mxu0 %v256
        %v290 = vpop.f32.mrf.mxu0
        %v291 = vadd.f32 0.0, %v290
        %292 = vmatmul.f32.gmra.mxu0 %v259
        %v293 = vpop.f32.mrf.mxu0
        %v294 = vadd.f32 0.0, %v293
        %295 = vmatmul.f32.gmra.mxu0 %v262
        %v296 = vpop.f32.mrf.mxu0
        %v297 = vadd.f32 0.0, %v296
        %298 = vmatmul.f32.gmra.mxu0 %v265
        %v299 = vpop.f32.mrf.mxu0
        %v300 = vadd.f32 0.0, %v299
        %301 = vmatmul.f32.gmra.mxu0 %v268
        %v302 = vpop.f32.mrf.mxu0
        %v303 = vadd.f32 0.0, %v302
        %304 = vdwg.mxu0
        %v305 = vld [vmem:[%s2] sm:$0xff]
        %v306 = vld [vmem:[%s2 + $0x8] sm:$0xff]
        %v307 = vld [vmem:[%s2 + $0x10] sm:$0xff]
        %v308 = vld [vmem:[%s2 + $0x18] sm:$0xff]
        %s309 = scalar_lea.vmem %s2, 32
        %v310 = vld [vmem:[%s309] sm:$0xff]
        %v311 = vld [vmem:[%s309 + $0x8] sm:$0xff]
        %v312 = vld [vmem:[%s309 + $0x10] sm:$0xff]
        %v313 = vld [vmem:[%s309 + $0x18] sm:$0xff]
        %vm314 = vcmask 261120
        %v316 = vsel %vm314, %v294, 0
        %v319 = vsel %vm314, %v297, 0
        %321 = vmatpush.msra.mxu0 0.0
        %322 = vmatpush.msra.mxu0 0.0
        %323 = vmatpush.msra.mxu0 0.0
        %324 = vmatpush.msra.mxu0 0.0
        %325 = vmatpush.msra.mxu0 0.0
        %326 = vmatpush.msra.mxu0 0.0
        %327 = vmatpush.msra.mxu0 0.0
        %328 = vmatpush.msra.mxu0 0.0
        %329 = vmatpush.msra.mxu0 0.0
        %330 = vmatpush.msra.mxu0 0.0
        %331 = vmatpush.msra.mxu0 0.0
        %332 = vmatpush.msra.mxu0 0.0
        %333 = vmatpush.msra.mxu0 %v313
        %334 = vmatpush.msra.mxu0 %v312
        %335 = vmatpush.msra.mxu0 %v311
        %336 = vmatpush.msra.mxu0 %v310
        %337 = vmatmul.f32.gmra.mxu0 %v316
        %v338 = vpop.f32.mrf.mxu0
        %v339 = vadd.f32 0.0, %v338
        %340 = vmatmul.f32.gmra.mxu0 %v319
        %v341 = vpop.f32.mrf.mxu0
        %v342 = vadd.f32 0.0, %v341
        %343 = vdwg.mxu0
        %v345 = vsel %vm314, %v288, 0
        %v348 = vsel %vm314, %v291, 0
        %350 = vmatpush.msra.mxu0 0.0
        %351 = vmatpush.msra.mxu0 0.0
        %352 = vmatpush.msra.mxu0 0.0
        %353 = vmatpush.msra.mxu0 0.0
        %354 = vmatpush.msra.mxu0 0.0
        %355 = vmatpush.msra.mxu0 0.0
        %356 = vmatpush.msra.mxu0 0.0
        %357 = vmatpush.msra.mxu0 0.0
        %358 = vmatpush.msra.mxu0 0.0
        %359 = vmatpush.msra.mxu0 0.0
        %360 = vmatpush.msra.mxu0 0.0
        %361 = vmatpush.msra.mxu0 0.0
        %362 = vmatpush.msra.mxu0 %v308
        %363 = vmatpush.msra.mxu0 %v307
        %364 = vmatpush.msra.mxu0 %v306
        %365 = vmatpush.msra.mxu0 %v305
        %366 = vmatmul.f32.gmra.mxu0 %v345
        %v367 = vpop.f32.mrf.mxu0
        %v368 = vadd.f32 %v339, %v367
        %369 = vmatmul.f32.gmra.mxu0 %v348
        %v370 = vpop.f32.mrf.mxu0
        %v371 = vadd.f32 %v342, %v370
        %372 = vdwg.mxu0
        %s373 = scalar_lea.vmem %s2, 64
        %v374 = vld [vmem:[%s373] sm:$0xff]
        %v375 = vld [vmem:[%s373 + $0x8] sm:$0xff]
        %v376 = vld [vmem:[%s373 + $0x10] sm:$0xff]
        %v377 = vld [vmem:[%s373 + $0x18] sm:$0xff]
        %v379 = vsel %vm314, %v300, 0
        %v382 = vsel %vm314, %v303, 0
        %384 = vmatpush.msra.mxu0 0.0
        %385 = vmatpush.msra.mxu0 0.0
        %386 = vmatpush.msra.mxu0 0.0
        %387 = vmatpush.msra.mxu0 0.0
        %388 = vmatpush.msra.mxu0 0.0
        %389 = vmatpush.msra.mxu0 0.0
        %390 = vmatpush.msra.mxu0 0.0
        %391 = vmatpush.msra.mxu0 0.0
        %392 = vmatpush.msra.mxu0 0.0
        %393 = vmatpush.msra.mxu0 0.0
        %394 = vmatpush.msra.mxu0 0.0
        %395 = vmatpush.msra.mxu0 0.0
        %396 = vmatpush.msra.mxu0 %v377
        %397 = vmatpush.msra.mxu0 %v376
        %398 = vmatpush.msra.mxu0 %v375
        %399 = vmatpush.msra.mxu0 %v374
        %400 = vmatmul.f32.gmra.mxu0 %v379
        %v401 = vpop.f32.mrf.mxu0
        %v402 = vadd.f32 0.0, %v401
        %403 = vmatmul.f32.gmra.mxu0 %v382
        %v404 = vpop.f32.mrf.mxu0
        %v405 = vadd.f32 0.0, %v404
        %406 = vdwg.mxu0
        %v407 = vadd.f32 %v368, %v402
        %v408 = vadd.f32 %v371, %v405
        %v409 = vmax.f32 %v407, 0.0
        %v410 = vmax.f32 %v408, 0.0
        %v411 = vsel %vm314, %v409, 0.0
        %412 = vadd.xlane.f32.xlu0 %v411
        %v413 = vpop.xlane.xlu0 %412
        %v414 = vsel %vm314, %v410, 0.0
        %415 = vadd.xlane.f32.xlu0 %v414
        %v416 = vpop.xlane.xlu0 %415
        %v417 = vrcp.pop 32.0
        %v418 = vmul.f32 32.0, %v417
        %v419 = vsub.f32 1.0, %v418
        %v420 = vmul.f32 %v417, %v419
        %v421 = vadd.f32 %v417, %v420
        %vm422 = vweird.f32 %v417
        %v423 = vsel %vm422, %v417, %v421
        %v424 = vmul.f32 %v413, %v423
        %v425 = vmul.f32 %v416, %v423
        %v426 = vsub.f32 %v409, %v424
        %v427 = vsub.f32 %v410, %v425
        %v428 = vmul.f32 %v426, %v426
        %v429 = vmul.f32 %v427, %v427
        %v430 = vsel %vm314, %v428, 0.0
        %431 = vadd.xlane.f32.xlu0 %v430
        %v432 = vpop.xlane.xlu0 %431
        %v433 = vsel %vm314, %v429, 0.0
        %434 = vadd.xlane.f32.xlu0 %v433
        %v435 = vpop.xlane.xlu0 %434
        %v436 = vmul.f32 %v432, %v423
        %v437 = vmul.f32 %v435, %v423
        %v438 = vadd.f32 %v436, 1e-05
        %v439 = vadd.f32 %v437, 1e-05
        %v440 = vrsqrt.pop %v438
        %v441 = vmul.f32 %v440, %v438
        %v442 = vmul.f32 %v441, %v440
        %v443 = vmul.f32 0.5, %v442
        %v444 = vsub.f32 1.5, %v443
        %v445 = vmul.f32 %v440, %v444
        %vm446 = vweird.f32 %v438
        %vm447 = vweird.f32 %v440
        %vm448 = vmor %vm446, %vm447
        %v449 = vsel %vm448, %v440, %v445
        %v450 = vrsqrt.pop %v439
        %v451 = vmul.f32 %v450, %v439
        %v452 = vmul.f32 %v451, %v450
        %v453 = vmul.f32 0.5, %v452
        %v454 = vsub.f32 1.5, %v453
        %v455 = vmul.f32 %v450, %v454
        %vm456 = vweird.f32 %v439
        %vm457 = vweird.f32 %v450
        %vm458 = vmor %vm456, %vm457
        %v459 = vsel %vm458, %v450, %v455
        %v460 = vmul.f32 %v426, %v449
        %v461 = vmul.f32 %v427, %v459
        %v462 = vld [vmem:[%s3] sm:$0x1]
        %v464 = vperm.slane %v462, 0
        %v466 = vmul.f32 %v460, %v464
        %v467 = vmul.f32 %v461, %v464
        %v468 = vld [vmem:[%s4] sm:$0x1]
        %v470 = vperm.slane %v468, 0
        %v472 = vadd.f32 %v466, %v470
        %v473 = vadd.f32 %v467, %v470
        %474 = vst.msk [vmem:[%s232] sm:$0xff] %vm314, %v472
        %475 = vst.msk [vmem:[%s232 + $0x8] sm:$0xff] %vm314, %v473
        %s476 = sand.u32 %s142, 1
        %s477 = scalar_lea.sflag [#allocation3], %s476
        %s478 = sand.u32 %s142, 1
        %s479 = smul.addr %s478, 16
        %s480 = scalar_lea.vmem [#allocation2], %s479
        // Predicated region
        $region41: #{tpu_custom_call.1} parent=39 // pred_check
          %p481 = pneg %p152
        $region42: #{tpu_custom_call.1} parent=39 // pred_check_branch
          %483 = sbr.rel (%p481) target = $region44
        $region43: #{tpu_custom_call.1} parent=39 // pred_region
          %485 = vsyncadd %s477, 0
          %s486 = smul.addr %s19, 2
          %s487 = smul.addr %s486, 8
          %s488 = scalar_lea.hbm %s5, %s487
          %s489 = sshll.u32 %s480, 4
          %s490 = int_to_ptr.vmem [resolvable:$true] %s489
          %s491 = sshll.u32 %s488, 4
          %s492 = int_to_ptr.hbm [resolvable:$true] %s491
          %497 = dma.vmem_to_hbm [thread:$0]  %s490, 256, %s492, %s477, 128, 128, 8
        $region44: #{tpu_custom_call.1} parent=39 // pred_fallthru
          _
      $region40: #{tpu_custom_call.1} parent=5 // pred_fallthru
        _
      %p498 = scmp.le.s32.totalorder 2, %s14
      // Predicated region
      $region45: #{tpu_custom_call.1} parent=5 // pred_check
        %p499 = pneg %p498
      $region46: #{tpu_custom_call.1} parent=5 // pred_check_branch
        %501 = sbr.rel (%p499) target = $region48
      $region47: #{tpu_custom_call.1} parent=5 // pred_region
        %s502 = ssub.s32 %s14, 2
        // Predicated region
        $region49: #{tpu_custom_call.1} parent=47 // pred_check
          %p503 = pneg %p158
        $region50: #{tpu_custom_call.1} parent=47 // pred_check_branch
          %505 = sbr.rel (%p503) target = $region52
        $region51: #{tpu_custom_call.1} parent=47 // pred_region
          %s506 = sand.u32 %s143, 1
          %s507 = scalar_lea.sflag [#allocation3], %s506
          %s508 = sand.u32 %s143, 1
          %s509 = smul.addr %s508, 16
          %s510 = scalar_lea.vmem [#allocation2], %s509
          %512 = dma.done %s507, 256
        $region52: #{tpu_custom_call.1} parent=47 // pred_fallthru
          _
      $region48: #{tpu_custom_call.1} parent=5 // pred_fallthru
        _
    $region6: #{tpu_custom_call.1} parent=1 // loop_footer
      %s18 = sadd.s32 1, %s14
    $region7: #{tpu_custom_call.1} parent=1 // loop_footer_branch
      %13 = sbr.rel target = $region3
    $region8: #{tpu_custom_call.1} parent=1 // loop_exit
      _
    %513 = vsyncpa [#allocation3], 1
    %s514 = scalar_lea.sflag [#allocation3], 1
    %515 = vsyncpa %s514, 1

</llo_original>
